<compile_context>
chip_gen: v7x
topology: tpu7x:2x2x1
jax: 0.10.0
libtpu: 0.0.40
codegen_flags: <defaults>
</compile_context>

<pallas_src>
import functools

import jax
import jax.numpy as jnp
from jax import lax
from jax.experimental import pallas as pl
from jax.experimental.pallas import tpu as pltpu

_BN_EPS = 1e-5


def _deconv_bn_relu_kernel(x_ref, w_ref, scale_ref, shift_ref, o_ref,
                           *, K, tile_h, wcout):
    # x_ref:     (1, Hpad_total, W*Cin)   H-dilated/padded input, W flattened, bf16/f32
    # w_ref:     (K, W*Cin, Wout*Cout)    per-vertical-tap block-Toeplitz weight
    # scale_ref: (1, Wout*Cout)           folded BN scale (f32), tiled per ox
    # shift_ref: (1, Wout*Cout)           folded BN shift + conv bias (f32)
    # o_ref:     (1, tile_h, Wout*Cout)
    h = pl.program_id(1)
    row0 = h * tile_h
    if tile_h % 8 == 0:
        row0 = pl.multiple_of(row0, 8)

    acc = jnp.zeros((tile_h, wcout), jnp.float32)
    for a in range(K):                       # K unrolled vertical taps
        xa = x_ref[0, pl.ds(row0 + a, tile_h), :]          # (tile_h, W*Cin) view-load
        acc = acc + jnp.dot(xa, w_ref[a],
                            preferred_element_type=jnp.float32)
    y = acc * scale_ref[0] + shift_ref[0]                  # BN (+ folded bias), f32
    o_ref[0] = jnp.maximum(y, 0.0).astype(o_ref.dtype)     # ReLU, lane-dense store


def _pad_params(kernel_size, stride):
    if stride == 1:
        return 0, 0
    elif stride == 2:
        return (kernel_size - 1) // 2, 1
    raise ValueError("only stride 1 or 2, like the PyTorch module")


def set_deconv_forward(x_nchw, params, *, kernel_size=5, stride=1,
                       batch_norm=True, compute_dtype=jnp.bfloat16,
                       h_tile_target=64):
    """Forward pass of set_deconv (pooling=False, dropout=None). NCHW in/out."""
    K = kernel_size
    p, op = _pad_params(K, stride)
    w_pt, bias, gamma, beta, run_mean, run_var = params

    N, Cin, H, W = x_nchw.shape
    Cout = w_pt.shape[1]

    pad_lo = K - 1 - p
    pad_hi = K - 1 - p + op
    Hd = (H - 1) * stride + 1
    Wd = (W - 1) * stride + 1
    Hout = Hd + pad_lo + pad_hi - (K - 1)        # == (H-1)*s - 2p + K + op
    Wout = Wd + pad_lo + pad_hi - (K - 1)

    # ---- Hout tiling (rounded up; extra rows are cropped at the end) ----
    tile_h = min(Hout, h_tile_target)
    n_h = -(-Hout // tile_h)
    Hout_pad = n_h * tile_h
    Hpad_total = Hout_pad + K - 1                # input rows the kernel may touch

    WCin = W * Cin
    WCout = Wout * Cout

    # ---- input: NCHW -> (N, H, W*Cin); materialize only the H dilation/pad ----
    x_flat = jnp.transpose(x_nchw, (0, 2, 3, 1)).reshape(N, H, WCin)
    x_flat = x_flat.astype(compute_dtype)
    x_hd = jnp.zeros((N, Hpad_total, WCin), compute_dtype)
    x_hd = x_hd.at[:, pad_lo:pad_lo + Hd:stride, :].set(x_flat)

    # ---- weight: ConvTranspose2d (Cin,Cout,kH,kW) -> flipped HWIO, then fold the
    #      W-direction dilation + padding into a block-Toeplitz matrix per
    #      vertical tap:  T[a][wi*Cin+ci, ox*Cout+co] = w_flip[a, b, ci, co]
    #      with b = pad_lo + wi*stride - ox when 0 <= b < K, else 0. ----
    w_flip = jnp.transpose(w_pt[:, :, ::-1, ::-1], (2, 3, 0, 1)).astype(jnp.float32)
    wi = jnp.arange(W)
    ox = jnp.arange(Wout)
    b_tap = pad_lo + wi[:, None] * stride - ox[None, :]          # (W, Wout)
    valid = (b_tap >= 0) & (b_tap < K)
    b_c = jnp.clip(b_tap, 0, K - 1)
    T = w_flip[:, b_c, :, :]                                     # (K, W, Wout, Cin, Cout)
    T = jnp.where(valid[None, :, :, None, None], T, 0.0)
    T = jnp.transpose(T, (0, 1, 3, 2, 4)).reshape(K, WCin, WCout)
    T = T.astype(compute_dtype)

    # ---- fold ConvTranspose bias into the BN shift; keep epilogue in f32 ----
    bias_f = bias.astype(jnp.float32)
    if batch_norm:
        inv_std = 1.0 / jnp.sqrt(run_var.astype(jnp.float32) + _BN_EPS)
        scale = gamma.astype(jnp.float32) * inv_std
        shift = beta.astype(jnp.float32) - run_mean.astype(jnp.float32) * scale
    else:
        scale = jnp.ones((Cout,), jnp.float32)
        shift = jnp.zeros((Cout,), jnp.float32)
    shift_total = shift + bias_f * scale
    scale_row = jnp.tile(scale, Wout).reshape(1, WCout)          # index ox*Cout+co -> scale[co]
    shift_row = jnp.tile(shift_total, Wout).reshape(1, WCout)

    kernel = functools.partial(_deconv_bn_relu_kernel,
                               K=K, tile_h=tile_h, wcout=WCout)

    out = pl.pallas_call(
        kernel,
        out_shape=jax.ShapeDtypeStruct((N, Hout_pad, WCout), jnp.float32),
        grid_spec=pltpu.PrefetchScalarGridSpec(
            num_scalar_prefetch=0,
            grid=(N, n_h),
            in_specs=[
                # full H slab per image (kept resident across h tiles), lane-dense W*Cin
                pl.BlockSpec((1, Hpad_total, WCin), lambda n, h: (n, 0, 0)),
                pl.BlockSpec((K, WCin, WCout), lambda n, h: (0, 0, 0)),
                pl.BlockSpec((1, WCout), lambda n, h: (0, 0)),
                pl.BlockSpec((1, WCout), lambda n, h: (0, 0)),
            ],
            out_specs=pl.BlockSpec((1, tile_h, WCout), lambda n, h: (n, h, 0)),
        ),
        compiler_params=pltpu.CompilerParams(
            dimension_semantics=("parallel", "parallel")),
    )(x_hd, T, scale_row, shift_row)

    out = out[:, :Hout, :].reshape(N, Hout, Wout, Cout)
    return jnp.transpose(out, (0, 3, 1, 2))                      # back to NCHW


def _ref_forward(x_nchw, params, *, kernel_size=5, stride=1, batch_norm=True,
                 compute_dtype=jnp.float32):
    """Pure-JAX reference (XLA conv) for the same forward pass."""
    K = kernel_size
    p, op = _pad_params(K, stride)
    w_pt, bias, gamma, beta, run_mean, run_var = params
    x = jnp.transpose(x_nchw, (0, 2, 3, 1)).astype(compute_dtype)
    w_flip = jnp.transpose(w_pt[:, :, ::-1, ::-1], (2, 3, 0, 1)).astype(compute_dtype)
    y = lax.conv_general_dilated(
        x, w_flip, window_strides=(1, 1),
        padding=[(K - 1 - p, K - 1 - p + op), (K - 1 - p, K - 1 - p + op)],
        lhs_dilation=(stride, stride),
        dimension_numbers=("NHWC", "HWIO", "NHWC"),
        preferred_element_type=jnp.float32)
    y = y + bias.astype(jnp.float32)
    if batch_norm:
        y = (y - run_mean) / jnp.sqrt(run_var + _BN_EPS) * gamma + beta
    y = jnp.maximum(y, 0.0)
    return jnp.transpose(y, (0, 3, 1, 2))


if __name__ == "__main__":
    # Small deterministic setup: batch=2, Cin=4, H=W=16, Cout=8, kernel=5.
    N, Cin, H, W, Cout, K = 2, 4, 16, 16, 8, 5
    key = jax.random.PRNGKey(0)
    kx, kw, kb, kg, kbe, km, kv = jax.random.split(key, 7)

    x = jax.random.normal(kx, (N, Cin, H, W), jnp.float32)
    w_pt = 0.1 * jax.random.normal(kw, (Cin, Cout, K, K), jnp.float32)
    bias = 0.1 * jax.random.normal(kb, (Cout,), jnp.float32)
    gamma = 1.0 + 0.1 * jax.random.normal(kg, (Cout,), jnp.float32)
    beta = 0.1 * jax.random.normal(kbe, (Cout,), jnp.float32)
    run_mean = 0.05 * jax.random.normal(km, (Cout,), jnp.float32)
    run_var = jax.random.uniform(kv, (Cout,), jnp.float32, 0.5, 1.5)
    params = (w_pt, bias, gamma, beta, run_mean, run_var)

    ok = True
    for stride in (1, 2):
        ref = jax.block_until_ready(
            _ref_forward(x, params, kernel_size=K, stride=stride))

        # f32 compute path: tight-ish check of the Toeplitz/tiling restructuring.
        out32 = jax.block_until_ready(
            set_deconv_forward(x, params, kernel_size=K, stride=stride,
                               compute_dtype=jnp.float32))
        if out32.shape != ref.shape:
            ok = False
            print("shape mismatch (f32) stride", stride, out32.shape, ref.shape)
        elif not jnp.allclose(out32, ref, atol=1e-3, rtol=1e-3):
            ok = False
            print("mismatch (f32) stride", stride,
                  float(jnp.max(jnp.abs(out32 - ref))))

        # default bf16 MXU path: loose check (bf16 input rounding).
        outbf = jax.block_until_ready(
            set_deconv_forward(x, params, kernel_size=K, stride=stride))
        if outbf.shape != ref.shape:
            ok = False
            print("shape mismatch (bf16) stride", stride, outbf.shape, ref.shape)
        elif not jnp.allclose(outbf, ref, atol=1e-1, rtol=1e-1):
            ok = False
            print("mismatch (bf16) stride", stride,
                  float(jnp.max(jnp.abs(outbf - ref))))

    if ok:
        print("KERNEL_OK")
</pallas_src>

<mosaic_0001>
module attributes {stable_mosaic.version = 11 : i64} {
  func.func @_deconv_bn_relu_kernel(%arg0: i32, %arg1: i32, %arg2: memref<1x24x64xf32, #tpu.memory_space<vmem>>, %arg3: memref<5x64x160xf32, #tpu.memory_space<vmem>>, %arg4: memref<1x160xf32, #tpu.memory_space<vmem>>, %arg5: memref<1x160xf32, #tpu.memory_space<vmem>>, %arg6: memref<1x20x160xf32, #tpu.memory_space<vmem>>) attributes {dimension_semantics = [#tpu.dimension_semantics<parallel>, #tpu.dimension_semantics<parallel>], iteration_bounds = array<i64: 2, 1>, scalar_prefetch = 0 : i64, scratch_operands = 0 : i64, tpu.core_type = #tpu.core_type<tc>, window_params = [{transform_indices = @transform_0, window_bounds = array<i64: 1, 24, 64>}, {pipeline_mode = #tpu.pipeline_mode<synchronous>, transform_indices = @transform_1, window_bounds = array<i64: 5, 64, 160>}, {pipeline_mode = #tpu.pipeline_mode<synchronous>, transform_indices = @transform_2, window_bounds = array<i64: 1, 160>}, {pipeline_mode = #tpu.pipeline_mode<synchronous>, transform_indices = @transform_3, window_bounds = array<i64: 1, 160>}, {transform_indices = @transform_4, window_bounds = array<i64: 1, 20, 160>}]} {
    %c20_i32 = arith.constant 20 : i32
    %0 = arith.muli %arg1, %c20_i32 : i32
    %cst = arith.constant 0.000000e+00 : f32
    %1 = vector.broadcast %cst : f32 to vector<20x160xf32>
    %c0_i32 = arith.constant 0 : i32
    %2 = arith.addi %0, %c0_i32 : i32
    %c0 = arith.constant 0 : index
    %3 = arith.index_cast %2 : i32 to index
    %c0_0 = arith.constant 0 : index
    %4 = vector.load %arg2[%c0, %3, %c0_0] : memref<1x24x64xf32, #tpu.memory_space<vmem>>, vector<1x20x64xf32>
    %5 = vector.shape_cast %4 : vector<1x20x64xf32> to vector<20x64xf32>
    %c0_1 = arith.constant 0 : index
    %c0_2 = arith.constant 0 : index
    %c0_3 = arith.constant 0 : index
    %6 = vector.load %arg3[%c0_1, %c0_2, %c0_3] : memref<5x64x160xf32, #tpu.memory_space<vmem>>, vector<1x64x160xf32>
    %7 = vector.shape_cast %6 : vector<1x64x160xf32> to vector<64x160xf32>
    %cst_4 = arith.constant dense<0.000000e+00> : vector<20x160xf32>
    %8 = tpu.matmul %5, %7, %cst_4 {dimension_numbers = #tpu.dot_dimension_numbers<[1], [0], [0], [1], [0, 0, 1, 1], [], []>} : vector<20x64xf32>, vector<64x160xf32>, vector<20x160xf32> -> vector<20x160xf32>
    %9 = arith.addf %1, %8 : vector<20x160xf32>
    %c1_i32 = arith.constant 1 : i32
    %10 = arith.addi %0, %c1_i32 : i32
    %c0_5 = arith.constant 0 : index
    %11 = arith.index_cast %10 : i32 to index
    %c0_6 = arith.constant 0 : index
    %12 = vector.load %arg2[%c0_5, %11, %c0_6] : memref<1x24x64xf32, #tpu.memory_space<vmem>>, vector<1x20x64xf32>
    %13 = vector.shape_cast %12 : vector<1x20x64xf32> to vector<20x64xf32>
    %c1 = arith.constant 1 : index
    %c0_7 = arith.constant 0 : index
    %c0_8 = arith.constant 0 : index
    %14 = vector.load %arg3[%c1, %c0_7, %c0_8] : memref<5x64x160xf32, #tpu.memory_space<vmem>>, vector<1x64x160xf32>
    %15 = vector.shape_cast %14 : vector<1x64x160xf32> to vector<64x160xf32>
    %cst_9 = arith.constant dense<0.000000e+00> : vector<20x160xf32>
    %16 = tpu.matmul %13, %15, %cst_9 {dimension_numbers = #tpu.dot_dimension_numbers<[1], [0], [0], [1], [0, 0, 1, 1], [], []>} : vector<20x64xf32>, vector<64x160xf32>, vector<20x160xf32> -> vector<20x160xf32>
    %17 = arith.addf %9, %16 : vector<20x160xf32>
    %c2_i32 = arith.constant 2 : i32
    %18 = arith.addi %0, %c2_i32 : i32
    %c0_10 = arith.constant 0 : index
    %19 = arith.index_cast %18 : i32 to index
    %c0_11 = arith.constant 0 : index
    %20 = vector.load %arg2[%c0_10, %19, %c0_11] : memref<1x24x64xf32, #tpu.memory_space<vmem>>, vector<1x20x64xf32>
    %21 = vector.shape_cast %20 : vector<1x20x64xf32> to vector<20x64xf32>
    %c2 = arith.constant 2 : index
    %c0_12 = arith.constant 0 : index
    %c0_13 = arith.constant 0 : index
    %22 = vector.load %arg3[%c2, %c0_12, %c0_13] : memref<5x64x160xf32, #tpu.memory_space<vmem>>, vector<1x64x160xf32>
    %23 = vector.shape_cast %22 : vector<1x64x160xf32> to vector<64x160xf32>
    %cst_14 = arith.constant dense<0.000000e+00> : vector<20x160xf32>
    %24 = tpu.matmul %21, %23, %cst_14 {dimension_numbers = #tpu.dot_dimension_numbers<[1], [0], [0], [1], [0, 0, 1, 1], [], []>} : vector<20x64xf32>, vector<64x160xf32>, vector<20x160xf32> -> vector<20x160xf32>
    %25 = arith.addf %17, %24 : vector<20x160xf32>
    %c3_i32 = arith.constant 3 : i32
    %26 = arith.addi %0, %c3_i32 : i32
    %c0_15 = arith.constant 0 : index
    %27 = arith.index_cast %26 : i32 to index
    %c0_16 = arith.constant 0 : index
    %28 = vector.load %arg2[%c0_15, %27, %c0_16] : memref<1x24x64xf32, #tpu.memory_space<vmem>>, vector<1x20x64xf32>
    %29 = vector.shape_cast %28 : vector<1x20x64xf32> to vector<20x64xf32>
    %c3 = arith.constant 3 : index
    %c0_17 = arith.constant 0 : index
    %c0_18 = arith.constant 0 : index
    %30 = vector.load %arg3[%c3, %c0_17, %c0_18] : memref<5x64x160xf32, #tpu.memory_space<vmem>>, vector<1x64x160xf32>
    %31 = vector.shape_cast %30 : vector<1x64x160xf32> to vector<64x160xf32>
    %cst_19 = arith.constant dense<0.000000e+00> : vector<20x160xf32>
    %32 = tpu.matmul %29, %31, %cst_19 {dimension_numbers = #tpu.dot_dimension_numbers<[1], [0], [0], [1], [0, 0, 1, 1], [], []>} : vector<20x64xf32>, vector<64x160xf32>, vector<20x160xf32> -> vector<20x160xf32>
    %33 = arith.addf %25, %32 : vector<20x160xf32>
    %c4_i32 = arith.constant 4 : i32
    %34 = arith.addi %0, %c4_i32 : i32
    %c0_20 = arith.constant 0 : index
    %35 = arith.index_cast %34 : i32 to index
    %c0_21 = arith.constant 0 : index
    %36 = vector.load %arg2[%c0_20, %35, %c0_21] : memref<1x24x64xf32, #tpu.memory_space<vmem>>, vector<1x20x64xf32>
    %37 = vector.shape_cast %36 : vector<1x20x64xf32> to vector<20x64xf32>
    %c4 = arith.constant 4 : index
    %c0_22 = arith.constant 0 : index
    %c0_23 = arith.constant 0 : index
    %38 = vector.load %arg3[%c4, %c0_22, %c0_23] : memref<5x64x160xf32, #tpu.memory_space<vmem>>, vector<1x64x160xf32>
    %39 = vector.shape_cast %38 : vector<1x64x160xf32> to vector<64x160xf32>
    %cst_24 = arith.constant dense<0.000000e+00> : vector<20x160xf32>
    %40 = tpu.matmul %37, %39, %cst_24 {dimension_numbers = #tpu.dot_dimension_numbers<[1], [0], [0], [1], [0, 0, 1, 1], [], []>} : vector<20x64xf32>, vector<64x160xf32>, vector<20x160xf32> -> vector<20x160xf32>
    %41 = arith.addf %33, %40 : vector<20x160xf32>
    %c0_25 = arith.constant 0 : index
    %c0_26 = arith.constant 0 : index
    %42 = vector.load %arg4[%c0_25, %c0_26] : memref<1x160xf32, #tpu.memory_space<vmem>>, vector<1x160xf32>
    %43 = vector.shape_cast %42 : vector<1x160xf32> to vector<160xf32>
    %44 = vector.shape_cast %43 : vector<160xf32> to vector<1x160xf32>
    %45 = vector.broadcast %44 : vector<1x160xf32> to vector<20x160xf32>
    %46 = arith.mulf %41, %45 : vector<20x160xf32>
    %c0_27 = arith.constant 0 : index
    %c0_28 = arith.constant 0 : index
    %47 = vector.load %arg5[%c0_27, %c0_28] : memref<1x160xf32, #tpu.memory_space<vmem>>, vector<1x160xf32>
    %48 = vector.shape_cast %47 : vector<1x160xf32> to vector<160xf32>
    %49 = vector.shape_cast %48 : vector<160xf32> to vector<1x160xf32>
    %50 = vector.broadcast %49 : vector<1x160xf32> to vector<20x160xf32>
    %51 = arith.addf %46, %50 : vector<20x160xf32>
    %cst_29 = arith.constant 0.000000e+00 : f32
    %52 = vector.broadcast %cst_29 : f32 to vector<20x160xf32>
    %53 = arith.maximumf %51, %52 : vector<20x160xf32>
    %c0_30 = arith.constant 0 : index
    %c0_31 = arith.constant 0 : index
    %c0_32 = arith.constant 0 : index
    %54 = vector.load %arg6[%c0_30, %c0_31, %c0_32] : memref<1x20x160xf32, #tpu.memory_space<vmem>>, vector<1x20x160xf32>
    %55 = vector.shape_cast %54 : vector<1x20x160xf32> to vector<20x160xf32>
    %56 = vector.shape_cast %53 : vector<20x160xf32> to vector<1x20x160xf32>
    tpu.vector_store %arg6[%c0_30, %c0_31, %c0_32], %56 {strides = array<i32>} : memref<1x20x160xf32, #tpu.memory_space<vmem>>, vector<1x20x160xf32>,
    return
  }
  func.func @transform_0(%arg0: i32, %arg1: i32) -> (i32, i32, i32) {
    %c0_i32 = arith.constant 0 : i32
    %c0_i32_0 = arith.constant 0 : i32
    %c0_i32_1 = arith.constant 0 : i32
    return %arg0, %c0_i32, %c0_i32_0 : i32, i32, i32
  }
  func.func @transform_1(%arg0: i32, %arg1: i32) -> (i32, i32, i32) {
    %c0_i32 = arith.constant 0 : i32
    %c0_i32_0 = arith.constant 0 : i32
    %c0_i32_1 = arith.constant 0 : i32
    %c0_i32_2 = arith.constant 0 : i32
    return %c0_i32, %c0_i32_0, %c0_i32_1 : i32, i32, i32
  }
  func.func @transform_2(%arg0: i32, %arg1: i32) -> (i32, i32) {
    %c0_i32 = arith.constant 0 : i32
    %c0_i32_0 = arith.constant 0 : i32
    %c0_i32_1 = arith.constant 0 : i32
    return %c0_i32, %c0_i32_0 : i32, i32
  }
  func.func @transform_3(%arg0: i32, %arg1: i32) -> (i32, i32) {
    %c0_i32 = arith.constant 0 : i32
    %c0_i32_0 = arith.constant 0 : i32
    %c0_i32_1 = arith.constant 0 : i32
    return %c0_i32, %c0_i32_0 : i32, i32
  }
  func.func @transform_4(%arg0: i32, %arg1: i32) -> (i32, i32, i32) {
    %c0_i32 = arith.constant 0 : i32
    %c0_i32_0 = arith.constant 0 : i32
    return %arg0, %arg1, %c0_i32 : i32, i32, i32
  }
}

</mosaic_0001>

<llo_original>
// kernel: tpu_custom_call.1
$region0: #{tpu_custom_call.1}
  #allocation0 [shape = 'u32[]', space=smem, size = 0x4, offset = 0x4, fixed_abs, tag = 'smem constant byte address 0x4 - core index']
  #allocation1 [shape = 'u32[144,128]{1,0:T(1,128)}', space=vmem, size = 0x12000, scoped, tag = 'internal scratch']
  %s0 = inlined_call_operand.hbm [shape: f32[2,24,64], index: 0, kind: input, shape index: {}]
  %s1 = inlined_call_operand.hbm [shape: f32[5,64,160], index: 1, kind: input, shape index: {}]
  %s2 = inlined_call_operand.vmem [shape: f32[1,160], index: 2, kind: input, shape index: {}]
  %s3 = inlined_call_operand.vmem [shape: f32[1,160], index: 3, kind: input, shape index: {}]
  %s4 = inlined_call_operand.vmem [shape: f32[2,20,160], index: 4, kind: output, shape index: {}]
  %s5 = sld [smem:[#allocation0]]
  $region57: #{tpu_custom_call.1} parent=0
    _
  %s7 = ssub.s32 1, %s5
  %s8 = scalar_select 0, %s7, %s5
  $region1: #{tpu_custom_call.1} parent=0
    #allocation2 [shape = 'u8[24576]{0}', space=vmem, size = 0x6000, scoped, tag = 'input window, operand 0']
    #allocation3 [shape = 's32[2]{0}', space=sflag, size = 0x8, scoped, tag = 'scoped memory for tpu_custom_call.1']
    #allocation4 [shape = 'u8[327680]{0}', space=vmem, size = 0x50000, scoped, tag = 'input window, operand 1, single buffered']
    #allocation5 [shape = 's32[1]{0}', space=sflag, size = 0x4, scoped, tag = 'scoped memory for tpu_custom_call.1']
    %9 = vsyncpa [#allocation3], 0
    %s10 = scalar_lea.sflag [#allocation3], 1
    %11 = vsyncpa %s10, 0
    %12 = vsyncpa [#allocation5], 0
    loop: start=0, step=1, limit=4
    $region2: #{tpu_custom_call.1} parent=1 // loop_pre_header
      _
    $region3: #{tpu_custom_call.1} parent=1 // loop_header
      %s14 = sphi 0, %s18
      %p15 = scmp.ge.s32.totalorder %s14, 4
      %s21 = sphi 0, %s33
      %s22 = sphi 0, %s29
      %s23 = sphi 0, %s21
      %s24 = sphi 0, %s22
      %s25 = sphi 0, %s23
      %s26 = sphi 0, %s24
      %s36 = sphi 0, %s38
      %s39 = sphi 0, %s36
      %s40 = sphi 0, %s39
      %s56 = sphi 0, %s40
      %s60 = sphi 0, %s60
      %s62 = sphi 0, %s60
      %s63 = sphi 0, %s62
      %s77 = sphi 0, %s63
      %s81 = sphi 0, %s81
      %s83 = sphi 0, %s81
      %s84 = sphi 0, %s83
      %s98 = sphi 0, %s84
      %s102 = sphi 0, %s102
      %s104 = sphi 0, %s102
      %s105 = sphi 0, %s104
      %s119 = sphi 0, %s105
      %s127 = sphi 0, %s129
      %s130 = sphi 0, %s127
      %s131 = sphi 0, %s130
      %s147 = sphi 0, %s131
    $region4: #{tpu_custom_call.1} parent=1 // loop_header_branch
      %17 = sbr.rel (%p15) target = $region8
    $region5: #{tpu_custom_call.1} parent=1 // loop_body
      %s19 = ssub.s32 %s14, 1
      %s20 = ssub.s32 %s14, 2
      %s27 = sadd.s32 1, %s22
      %p28 = scmp.ge.s32.totalorder %s27, 1
      %s29 = scalar_select %p28, 0, %s27
      %s30 = sadd.s32 1, %s21
      %s31 = scalar_select %p28, %s30, %s21
      %p32 = scmp.ge.s32.totalorder %s31, 2
      %s33 = scalar_select %p32, 0, %s31
      %s34 = ssub.s32 %s21, %s33
      %p35 = scmp.eq.s32.totalorder %s34, 0
      %s37 = sadd.s32 %s36, 1
      %s38 = scalar_select %p35, %s36, %s37
      %p41 = pneg %p35
      %p42 = scmp.eq.s32.totalorder %s14, 1
      %p43 = por %p41, %p42
      %p44 = scmp.ne.s32.totalorder %s36, %s39
      %p45 = scmp.eq.s32.totalorder %s14, 0
      %p46 = por %p44, %p45
      %p47 = scmp.ne.s32.totalorder %s36, %s39
      %p48 = scmp.eq.s32.totalorder %s19, 1
      %p49 = por %p47, %p48
      %p50 = scmp.ne.s32.totalorder %s39, %s40
      %p51 = scmp.eq.s32.totalorder %s19, 0
      %p52 = por %p50, %p51
      %p53 = scmp.ne.s32.totalorder %s39, %s40
      %p54 = scmp.eq.s32.totalorder %s20, 1
      %p55 = por %p53, %p54
      %p57 = scmp.ne.s32.totalorder %s40, %s56
      %p58 = scmp.eq.s32.totalorder %s20, 0
      %p59 = por %p57, %p58
      %s61 = sadd.s32 %s60, 1
      %p64 = scmp.eq.s32.totalorder %s14, 1
      %p65 = scmp.ne.s32.totalorder %s60, %s62
      %p66 = scmp.eq.s32.totalorder %s14, 0
      %p67 = por %p65, %p66
      %p68 = scmp.ne.s32.totalorder %s60, %s62
      %p69 = scmp.eq.s32.totalorder %s19, 1
      %p70 = por %p68, %p69
      %p71 = scmp.ne.s32.totalorder %s62, %s63
      %p72 = scmp.eq.s32.totalorder %s19, 0
      %p73 = por %p71, %p72
      %p74 = scmp.ne.s32.totalorder %s62, %s63
      %p75 = scmp.eq.s32.totalorder %s20, 1
      %p76 = por %p74, %p75
      %p78 = scmp.ne.s32.totalorder %s63, %s77
      %p79 = scmp.eq.s32.totalorder %s20, 0
      %p80 = por %p78, %p79
      %s82 = sadd.s32 %s81, 1
      %p85 = scmp.eq.s32.totalorder %s14, 1
      %p86 = scmp.ne.s32.totalorder %s81, %s83
      %p87 = scmp.eq.s32.totalorder %s14, 0
      %p88 = por %p86, %p87
      %p89 = scmp.ne.s32.totalorder %s81, %s83
      %p90 = scmp.eq.s32.totalorder %s19, 1
      %p91 = por %p89, %p90
      %p92 = scmp.ne.s32.totalorder %s83, %s84
      %p93 = scmp.eq.s32.totalorder %s19, 0
      %p94 = por %p92, %p93
      %p95 = scmp.ne.s32.totalorder %s83, %s84
      %p96 = scmp.eq.s32.totalorder %s20, 1
      %p97 = por %p95, %p96
      %p99 = scmp.ne.s32.totalorder %s84, %s98
      %p100 = scmp.eq.s32.totalorder %s20, 0
      %p101 = por %p99, %p100
      %s103 = sadd.s32 %s102, 1
      %p106 = scmp.eq.s32.totalorder %s14, 1
      %p107 = scmp.ne.s32.totalorder %s102, %s104
      %p108 = scmp.eq.s32.totalorder %s14, 0
      %p109 = por %p107, %p108
      %p110 = scmp.ne.s32.totalorder %s102, %s104
      %p111 = scmp.eq.s32.totalorder %s19, 1
      %p112 = por %p110, %p111
      %p113 = scmp.ne.s32.totalorder %s104, %s105
      %p114 = scmp.eq.s32.totalorder %s19, 0
      %p115 = por %p113, %p114
      %p116 = scmp.ne.s32.totalorder %s104, %s105
      %p117 = scmp.eq.s32.totalorder %s20, 1
      %p118 = por %p116, %p117
      %p120 = scmp.ne.s32.totalorder %s105, %s119
      %p121 = scmp.eq.s32.totalorder %s20, 0
      %p122 = por %p120, %p121
      %s123 = ssub.s32 %s21, %s33
      %s124 = ssub.s32 %s22, %s29
      %s125 = sor.u32 %s123, %s124
      %p126 = scmp.eq.s32.totalorder %s125, 0
      %s128 = sadd.s32 %s127, 1
      %s129 = scalar_select %p126, %s127, %s128
      %p132 = pneg %p126
      %p133 = scmp.eq.s32.totalorder %s14, 1
      %p134 = por %p132, %p133
      %p135 = scmp.ne.s32.totalorder %s127, %s130
      %p136 = scmp.eq.s32.totalorder %s14, 0
      %p137 = por %p135, %p136
      %p138 = scmp.ne.s32.totalorder %s127, %s130
      %p139 = scmp.eq.s32.totalorder %s19, 1
      %p140 = por %p138, %p139
      %p141 = scmp.ne.s32.totalorder %s130, %s131
      %p142 = scmp.eq.s32.totalorder %s19, 0
      %p143 = por %p141, %p142
      %p144 = scmp.ne.s32.totalorder %s130, %s131
      %p145 = scmp.eq.s32.totalorder %s20, 1
      %p146 = por %p144, %p145
      %p148 = scmp.ne.s32.totalorder %s131, %s147
      %p149 = scmp.eq.s32.totalorder %s20, 0
      %p150 = por %p148, %p149
      %p151 = scmp.le.s32.totalorder 1, %s14
      %p152 = scmp.lt.s32.totalorder %s14, 3
      %p153 = pnand %p151, %p152
      %p154 = pneg %p153
      // Predicated region
      $region9: #{tpu_custom_call.1} parent=5 // pred_check
        _
      $region10: #{tpu_custom_call.1} parent=5 // pred_check_branch
        %156 = sbr.rel (%p153) target = $region12
      $region11: #{tpu_custom_call.1} parent=5 // pred_region
        %s157 = ssub.s32 %s14, 1
        // Predicated region
        $region13: #{tpu_custom_call.1} parent=11 // pred_check
          %p158 = pneg %p73
        $region14: #{tpu_custom_call.1} parent=11 // pred_check_branch
          %160 = sbr.rel (%p158) target = $region16
        $region15: #{tpu_custom_call.1} parent=11 // pred_region
          %s162 = ssub.s32 10240, 10240
          %163 = vsyncadd [#allocation5], %s162
          %s164 = sshll.u32 [#allocation4], 4
          %s165 = int_to_ptr.vmem [resolvable:$true] %s164
          %170 = dma.hbm_to_vmem [thread:$0]  %s1, 10240, %s165, [#allocation5], 256, 256, 16
        $region16: #{tpu_custom_call.1} parent=11 // pred_fallthru
          _
        // Predicated region
        $region17: #{tpu_custom_call.1} parent=11 // pred_check
          %p171 = pneg %p94
        $region18: #{tpu_custom_call.1} parent=11 // pred_check_branch
          %173 = sbr.rel (%p171) target = $region20
        $region19: #{tpu_custom_call.1} parent=11 // pred_region
          _
        $region20: #{tpu_custom_call.1} parent=11 // pred_fallthru
          _
        // Predicated region
        $region21: #{tpu_custom_call.1} parent=11 // pred_check
          %p174 = pneg %p115
        $region22: #{tpu_custom_call.1} parent=11 // pred_check_branch
          %176 = sbr.rel (%p174) target = $region24
        $region23: #{tpu_custom_call.1} parent=11 // pred_region
          _
        $region24: #{tpu_custom_call.1} parent=11 // pred_fallthru
          _
      $region12: #{tpu_custom_call.1} parent=5 // pred_fallthru
        _
      %p177 = scmp.lt.s32.totalorder %s14, 2
      // Predicated region
      $region25: #{tpu_custom_call.1} parent=5 // pred_check
        %p178 = pneg %p177
      $region26: #{tpu_custom_call.1} parent=5 // pred_check_branch
        %180 = sbr.rel (%p178) target = $region28
      $region27: #{tpu_custom_call.1} parent=5 // pred_region
        // Predicated region
        $region29: #{tpu_custom_call.1} parent=27 // pred_check
          %p181 = pneg %p46
        $region30: #{tpu_custom_call.1} parent=27 // pred_check_branch
          %183 = sbr.rel (%p181) target = $region32
        $region31: #{tpu_custom_call.1} parent=27 // pred_region
          %s184 = sand.u32 %s36, 1
          %s185 = scalar_lea.sflag [#allocation3], %s184
          %s186 = sand.u32 %s36, 1
          %s187 = smul.addr %s186, 24
          %s188 = scalar_lea.vmem [#allocation2], %s187
          %s190 = ssub.s32 384, 384
          %191 = vsyncadd %s185, %s190
          %s192 = smul.addr %s21, 3
          %s193 = smul.addr %s192, 128
          %s194 = scalar_lea.hbm %s0, %s193
          %s195 = sshll.u32 %s188, 4
          %s196 = int_to_ptr.vmem [resolvable:$true] %s195
          %201 = dma.hbm_to_vmem [thread:$0]  %s194, 384, %s196, %s185, 128, 128, 8
        $region32: #{tpu_custom_call.1} parent=27 // pred_fallthru
          _
      $region28: #{tpu_custom_call.1} parent=5 // pred_fallthru
        _
      %p202 = scmp.le.s32.totalorder 1, %s14
      %p203 = scmp.lt.s32.totalorder %s14, 3
      %p204 = pnand %p202, %p203
      %p205 = pneg %p204
      // Predicated region
      $region33: #{tpu_custom_call.1} parent=5 // pred_check
        _
      $region34: #{tpu_custom_call.1} parent=5 // pred_check_branch
        %207 = sbr.rel (%p204) target = $region36
      $region35: #{tpu_custom_call.1} parent=5 // pred_region
        %s208 = ssub.s32 %s14, 1
        %s209 = sand.u32 %s39, 1
        %s210 = scalar_lea.sflag [#allocation3], %s209
        %s211 = sand.u32 %s39, 1
        %s212 = smul.addr %s211, 24
        %s213 = scalar_lea.vmem [#allocation2], %s212
        // Predicated region
        $region37: #{tpu_custom_call.1} parent=35 // pred_check
          %p214 = pneg %p52
        $region38: #{tpu_custom_call.1} parent=35 // pred_check_branch
          %216 = sbr.rel (%p214) target = $region40
        $region39: #{tpu_custom_call.1} parent=35 // pred_region
          %217 = dma.done %s210, 384
        $region40: #{tpu_custom_call.1} parent=35 // pred_fallthru
          _
        // Predicated region
        $region41: #{tpu_custom_call.1} parent=35 // pred_check
          %p218 = pneg %p73
        $region42: #{tpu_custom_call.1} parent=35 // pred_check_branch
          %220 = sbr.rel (%p218) target = $region44
        $region43: #{tpu_custom_call.1} parent=35 // pred_region
          %221 = dma.done [#allocation5], 10240
        $region44: #{tpu_custom_call.1} parent=35 // pred_fallthru
          _
        %s222 = sand.u32 %s39, 1
        %s223 = scalar_lea.sflag [#allocation3], %s222
        %s224 = sand.u32 %s39, 1
        %s225 = smul.addr %s224, 24
        %s226 = scalar_lea.vmem [#allocation2], %s225
        %p227 = pneg %p52
        %p228 = pneg %p49
        %p229 = pneg %p73
        %p230 = pneg %p70
        %p231 = pneg %p94
        %p232 = pneg %p91
        %p233 = pneg %p115
        %p234 = pneg %p112
        %p235 = pneg %p143
        %p236 = pneg %p140
        %s237 = smul.u32 3, %s24
        %p238 = scmp.lt.s32.totalorder %s23, 1
        %s239 = scalar_select %p238, %s23, 1
        %p240 = scmp.lt.s32.totalorder %s237, 2
        %s241 = scalar_select %p240, %s237, 2
        %s242 = smul.addr %s241, 2
        %s243 = smul.addr %s239, 6
        %s244 = sadd.s32 %s242, %s243
        %s245 = smul.addr %s244, 8
        %s246 = scalar_lea.vmem %s4, %s245
        %s247 = smul.u32 3, %s24
        %p248 = scmp.lt.s32.totalorder %s23, 1
        %s249 = scalar_select %p248, %s23, 1
        %p250 = scmp.lt.s32.totalorder %s247, 2
        %s251 = scalar_select %p250, %s247, 2
        %s252 = smul.addr %s251, 2
        %s253 = smul.addr %s249, 6
        %s254 = sadd.s32 %s252, %s253
        %s255 = smul.addr %s254, 8
        %s256 = scalar_lea.vmem %s4, %s255
        %s257 = smul.u32 3, %s24
        %s258 = smul.u32 %s24, 20
        %s259 = scalar_lea.vmem %s213, %s258 [#allocation2]
        %v260 = vld [vmem:[%s259] sm:$0xff]
        %v261 = vld [vmem:[%s259 + $0x8] sm:$0xff]
        %v262 = vld [vmem:[%s259 + $0x10] sm:$0xf]
        %v263 = vld [vmem:[#allocation4] sm:$0xff]
        %v264 = vld [vmem:[#allocation4 + $0x8] sm:$0xff]
        %v265 = vld [vmem:[#allocation4 + $0x10] sm:$0xff]
        %v266 = vld [vmem:[#allocation4 + $0x18] sm:$0xff]
        %v267 = vld [vmem:[#allocation4 + $0x20] sm:$0xff]
        %v268 = vld [vmem:[#allocation4 + $0x28] sm:$0xff]
        %v269 = vld [vmem:[#allocation4 + $0x30] sm:$0xff]
        %v270 = vld [vmem:[#allocation4 + $0x38] sm:$0xff]
        %v271 = vld [vmem:[#allocation4 + $0x40] sm:$0xff]
        %v272 = vld [vmem:[#allocation4 + $0x48] sm:$0xff]
        %v273 = vld [vmem:[#allocation4 + $0x50] sm:$0xff]
        %v274 = vld [vmem:[#allocation4 + $0x58] sm:$0xff]
        %v275 = vld [vmem:[#allocation4 + $0x60] sm:$0xff]
        %v276 = vld [vmem:[#allocation4 + $0x68] sm:$0xff]
        %v277 = vld [vmem:[#allocation4 + $0x70] sm:$0xff]
        %v278 = vld [vmem:[#allocation4 + $0x78] sm:$0xff]
        %s279 = sadd.s32 %s258, 1
        %s280 = scalar_lea.vmem %s213, %s279 [#allocation2]
        %v281 = vld [vmem:[%s280] sm:$0xff]
        %v282 = vld [vmem:[%s280 + $0x8] sm:$0xff]
        %v283 = vld [vmem:[%s280 + $0x10] sm:$0xf]
        %s284 = scalar_lea.vmem [#allocation4], 128
        %v285 = vld [vmem:[%s284] sm:$0xff]
        %v286 = vld [vmem:[%s284 + $0x8] sm:$0xff]
        %v287 = vld [vmem:[%s284 + $0x10] sm:$0xff]
        %v288 = vld [vmem:[%s284 + $0x18] sm:$0xff]
        %v289 = vld [vmem:[%s284 + $0x20] sm:$0xff]
        %v290 = vld [vmem:[%s284 + $0x28] sm:$0xff]
        %v291 = vld [vmem:[%s284 + $0x30] sm:$0xff]
        %v292 = vld [vmem:[%s284 + $0x38] sm:$0xff]
        %v293 = vld [vmem:[%s284 + $0x40] sm:$0xff]
        %v294 = vld [vmem:[%s284 + $0x48] sm:$0xff]
        %v295 = vld [vmem:[%s284 + $0x50] sm:$0xff]
        %v296 = vld [vmem:[%s284 + $0x58] sm:$0xff]
        %v297 = vld [vmem:[%s284 + $0x60] sm:$0xff]
        %v298 = vld [vmem:[%s284 + $0x68] sm:$0xff]
        %v299 = vld [vmem:[%s284 + $0x70] sm:$0xff]
        %v300 = vld [vmem:[%s284 + $0x78] sm:$0xff]
        %vm301 = vcmask 523264
        %v303 = vsel %vm301, %v281, 0
        %v306 = vsel %vm301, %v282, 0
        %v309 = vsel %vm301, %v283, 0
        %311 = vmatprep.subr.mxu0 %v286
        %312 = vmatpush1.msra.mxu0 %v285
        %313 = vmatprep.subr.mxu0 %v288
        %314 = vmatpush1.msra.mxu0 %v287
        %315 = vmatprep.subr.mxu0 %v290
        %316 = vmatpush1.msra.mxu0 %v289
        %317 = vmatprep.subr.mxu0 %v292
        %318 = vmatpush1.msra.mxu0 %v291
        %319 = vmatprep.subr.mxu0 %v294
        %320 = vmatpush1.msra.mxu0 %v293
        %321 = vmatprep.subr.mxu0 %v296
        %322 = vmatpush1.msra.mxu0 %v295
        %323 = vmatprep.subr.mxu0 %v298
        %324 = vmatpush1.msra.mxu0 %v297
        %325 = vmatprep.subr.mxu0 %v300
        %326 = vmatpush1.msra.mxu0 %v299
        %327 = vmatprep.subr.mxu0 0.0
        %328 = vmatpush1.msra.mxu0 0.0
        %329 = vmatprep.subr.mxu0 0.0
        %330 = vmatpush1.msra.mxu0 0.0
        %331 = vmatprep.subr.mxu0 0.0
        %332 = vmatpush1.msra.mxu0 0.0
        %333 = vmatprep.subr.mxu0 0.0
        %334 = vmatpush1.msra.mxu0 0.0
        %335 = vmatprep.subr.mxu0 0.0
        %336 = vmatpush1.msra.mxu0 0.0
        %337 = vmatprep.subr.mxu0 0.0
        %338 = vmatpush1.msra.mxu0 0.0
        %339 = vmatprep.subr.mxu0 0.0
        %340 = vmatpush1.msra.mxu0 0.0
        %341 = vmatprep.subr.mxu0 0.0
        %342 = vmatpush1.msra.mxu0 0.0
        %343 = vmatprep.subr.mxu0 0.0
        %344 = vmatpush1.msra.mxu0 0.0
        %345 = vmatprep.subr.mxu0 0.0
        %346 = vmatpush1.msra.mxu0 0.0
        %347 = vmatprep.subr.mxu0 0.0
        %348 = vmatpush1.msra.mxu0 0.0
        %349 = vmatprep.subr.mxu0 0.0
        %350 = vmatpush1.msra.mxu0 0.0
        %351 = vmatprep.subr.mxu0 0.0
        %352 = vmatpush1.msra.mxu0 0.0
        %353 = vmatprep.subr.mxu0 0.0
        %354 = vmatpush1.msra.mxu0 0.0
        %355 = vmatprep.subr.mxu0 0.0
        %356 = vmatpush1.msra.mxu0 0.0
        %357 = vmatprep.subr.mxu0 0.0
        %358 = vmatpush1.msra.mxu0 0.0
        %359 = vmatprep.subr.mxu0 0.0
        %360 = vmatpush1.msra.mxu0 0.0
        %361 = vmatprep.subr.mxu0 0.0
        %362 = vmatpush1.msra.mxu0 0.0
        %363 = vmatprep.subr.mxu0 0.0
        %364 = vmatpush1.msra.mxu0 0.0
        %365 = vmatprep.subr.mxu0 0.0
        %366 = vmatpush1.msra.mxu0 0.0
        %367 = vmatprep.subr.mxu0 0.0
        %368 = vmatpush1.msra.mxu0 0.0
        %369 = vmatprep.subr.mxu0 0.0
        %370 = vmatpush1.msra.mxu0 0.0
        %371 = vmatprep.subr.mxu0 0.0
        %372 = vmatpush1.msra.mxu0 0.0
        %373 = vmatprep.subr.mxu0 0.0
        %374 = vmatpush1.msra.mxu0 0.0
        %375 = vmatprep.mubr.f32.mxu0 0.0
        %376 = vmatmul.mubr.f32.gmra.mrb[0].mxu0 %v303
        %v377 = vpop.f32.mrb[0].mxu0
        %v378 = vadd.f32 0.0, %v377
        %v379 = vpop.f32.mrb[0].mxu0
        %v380 = vadd.f32 0.0, %v379
        %381 = vmatprep.mubr.f32.mxu0 0.0
        %382 = vmatmul.mubr.f32.gmra.mrb[0].mxu0 %v306
        %v383 = vpop.f32.mrb[0].mxu0
        %v384 = vadd.f32 0.0, %v383
        %v385 = vpop.f32.mrb[0].mxu0
        %v386 = vadd.f32 0.0, %v385
        %387 = vmatprep.mubr.f32.mxu0 0.0
        %388 = vmatmul.mubr.f32.gmra.mrb[0].mxu0 %v309
        %v389 = vpop.f32.mrb[0].mxu0
        %v390 = vadd.f32 0.0, %v389
        %v391 = vpop.f32.mrb[0].mxu0
        %v392 = vadd.f32 0.0, %v391
        %393 = vdwg.mxu0
        %v395 = vsel %vm301, %v260, 0
        %v398 = vsel %vm301, %v261, 0
        %v401 = vsel %vm301, %v262, 0
        %403 = vmatprep.subr.mxu0 %v264
        %404 = vmatpush1.msra.mxu0 %v263
        %405 = vmatprep.subr.mxu0 %v266
        %406 = vmatpush1.msra.mxu0 %v265
        %407 = vmatprep.subr.mxu0 %v268
        %408 = vmatpush1.msra.mxu0 %v267
        %409 = vmatprep.subr.mxu0 %v270
        %410 = vmatpush1.msra.mxu0 %v269
        %411 = vmatprep.subr.mxu0 %v272
        %412 = vmatpush1.msra.mxu0 %v271
        %413 = vmatprep.subr.mxu0 %v274
        %414 = vmatpush1.msra.mxu0 %v273
        %415 = vmatprep.subr.mxu0 %v276
        %416 = vmatpush1.msra.mxu0 %v275
        %417 = vmatprep.subr.mxu0 %v278
        %418 = vmatpush1.msra.mxu0 %v277
        %419 = vmatprep.subr.mxu0 0.0
        %420 = vmatpush1.msra.mxu0 0.0
        %421 = vmatprep.subr.mxu0 0.0
        %422 = vmatpush1.msra.mxu0 0.0
        %423 = vmatprep.subr.mxu0 0.0
        %424 = vmatpush1.msra.mxu0 0.0
        %425 = vmatprep.subr.mxu0 0.0
        %426 = vmatpush1.msra.mxu0 0.0
        %427 = vmatprep.subr.mxu0 0.0
        %428 = vmatpush1.msra.mxu0 0.0
        %429 = vmatprep.subr.mxu0 0.0
        %430 = vmatpush1.msra.mxu0 0.0
        %431 = vmatprep.subr.mxu0 0.0
        %432 = vmatpush1.msra.mxu0 0.0
        %433 = vmatprep.subr.mxu0 0.0
        %434 = vmatpush1.msra.mxu0 0.0
        %435 = vmatprep.subr.mxu0 0.0
        %436 = vmatpush1.msra.mxu0 0.0
        %437 = vmatprep.subr.mxu0 0.0
        %438 = vmatpush1.msra.mxu0 0.0
        %439 = vmatprep.subr.mxu0 0.0
        %440 = vmatpush1.msra.mxu0 0.0
        %441 = vmatprep.subr.mxu0 0.0
        %442 = vmatpush1.msra.mxu0 0.0
        %443 = vmatprep.subr.mxu0 0.0
        %444 = vmatpush1.msra.mxu0 0.0
        %445 = vmatprep.subr.mxu0 0.0
        %446 = vmatpush1.msra.mxu0 0.0
        %447 = vmatprep.subr.mxu0 0.0
        %448 = vmatpush1.msra.mxu0 0.0
        %449 = vmatprep.subr.mxu0 0.0
        %450 = vmatpush1.msra.mxu0 0.0
        %451 = vmatprep.subr.mxu0 0.0
        %452 = vmatpush1.msra.mxu0 0.0
        %453 = vmatprep.subr.mxu0 0.0
        %454 = vmatpush1.msra.mxu0 0.0
        %455 = vmatprep.subr.mxu0 0.0
        %456 = vmatpush1.msra.mxu0 0.0
        %457 = vmatprep.subr.mxu0 0.0
        %458 = vmatpush1.msra.mxu0 0.0
        %459 = vmatprep.subr.mxu0 0.0
        %460 = vmatpush1.msra.mxu0 0.0
        %461 = vmatprep.subr.mxu0 0.0
        %462 = vmatpush1.msra.mxu0 0.0
        %463 = vmatprep.subr.mxu0 0.0
        %464 = vmatpush1.msra.mxu0 0.0
        %465 = vmatprep.subr.mxu0 0.0
        %466 = vmatpush1.msra.mxu0 0.0
        %467 = vmatprep.mubr.f32.mxu0 0.0
        %468 = vmatmul.mubr.f32.gmra.mrb[0].mxu0 %v395
        %v469 = vpop.f32.mrb[0].mxu0
        %v470 = vadd.f32 %v378, %v469
        %v471 = vpop.f32.mrb[0].mxu0
        %v472 = vadd.f32 %v380, %v471
        %473 = vmatprep.mubr.f32.mxu0 0.0
        %474 = vmatmul.mubr.f32.gmra.mrb[0].mxu0 %v398
        %v475 = vpop.f32.mrb[0].mxu0
        %v476 = vadd.f32 %v384, %v475
        %v477 = vpop.f32.mrb[0].mxu0
        %v478 = vadd.f32 %v386, %v477
        %479 = vmatprep.mubr.f32.mxu0 0.0
        %480 = vmatmul.mubr.f32.gmra.mrb[0].mxu0 %v401
        %v481 = vpop.f32.mrb[0].mxu0
        %v482 = vadd.f32 %v390, %v481
        %v483 = vpop.f32.mrb[0].mxu0
        %v484 = vadd.f32 %v392, %v483
        %485 = vdwg.mxu0
        %s486 = sadd.s32 %s258, 2
        %s487 = scalar_lea.vmem %s213, %s486 [#allocation2]
        %v488 = vld [vmem:[%s487] sm:$0xff]
        %v489 = vld [vmem:[%s487 + $0x8] sm:$0xff]
        %v490 = vld [vmem:[%s487 + $0x10] sm:$0xf]
        %s491 = scalar_lea.vmem [#allocation4], 256
        %v492 = vld [vmem:[%s491] sm:$0xff]
        %v493 = vld [vmem:[%s491 + $0x8] sm:$0xff]
        %v494 = vld [vmem:[%s491 + $0x10] sm:$0xff]
        %v495 = vld [vmem:[%s491 + $0x18] sm:$0xff]
        %v496 = vld [vmem:[%s491 + $0x20] sm:$0xff]
        %v497 = vld [vmem:[%s491 + $0x28] sm:$0xff]
        %v498 = vld [vmem:[%s491 + $0x30] sm:$0xff]
        %v499 = vld [vmem:[%s491 + $0x38] sm:$0xff]
        %v500 = vld [vmem:[%s491 + $0x40] sm:$0xff]
        %v501 = vld [vmem:[%s491 + $0x48] sm:$0xff]
        %v502 = vld [vmem:[%s491 + $0x50] sm:$0xff]
        %v503 = vld [vmem:[%s491 + $0x58] sm:$0xff]
        %v504 = vld [vmem:[%s491 + $0x60] sm:$0xff]
        %v505 = vld [vmem:[%s491 + $0x68] sm:$0xff]
        %v506 = vld [vmem:[%s491 + $0x70] sm:$0xff]
        %v507 = vld [vmem:[%s491 + $0x78] sm:$0xff]
        %v509 = vsel %vm301, %v488, 0
        %v512 = vsel %vm301, %v489, 0
        %v515 = vsel %vm301, %v490, 0
        %517 = vmatprep.subr.mxu0 %v493
        %518 = vmatpush1.msra.mxu0 %v492
        %519 = vmatprep.subr.mxu0 %v495
        %520 = vmatpush1.msra.mxu0 %v494
        %521 = vmatprep.subr.mxu0 %v497
        %522 = vmatpush1.msra.mxu0 %v496
        %523 = vmatprep.subr.mxu0 %v499
        %524 = vmatpush1.msra.mxu0 %v498
        %525 = vmatprep.subr.mxu0 %v501
        %526 = vmatpush1.msra.mxu0 %v500
        %527 = vmatprep.subr.mxu0 %v503
        %528 = vmatpush1.msra.mxu0 %v502
        %529 = vmatprep.subr.mxu0 %v505
        %530 = vmatpush1.msra.mxu0 %v504
        %531 = vmatprep.subr.mxu0 %v507
        %532 = vmatpush1.msra.mxu0 %v506
        %533 = vmatprep.subr.mxu0 0.0
        %534 = vmatpush1.msra.mxu0 0.0
        %535 = vmatprep.subr.mxu0 0.0
        %536 = vmatpush1.msra.mxu0 0.0
        %537 = vmatprep.subr.mxu0 0.0
        %538 = vmatpush1.msra.mxu0 0.0
        %539 = vmatprep.subr.mxu0 0.0
        %540 = vmatpush1.msra.mxu0 0.0
        %541 = vmatprep.subr.mxu0 0.0
        %542 = vmatpush1.msra.mxu0 0.0
        %543 = vmatprep.subr.mxu0 0.0
        %544 = vmatpush1.msra.mxu0 0.0
        %545 = vmatprep.subr.mxu0 0.0
        %546 = vmatpush1.msra.mxu0 0.0
        %547 = vmatprep.subr.mxu0 0.0
        %548 = vmatpush1.msra.mxu0 0.0
        %549 = vmatprep.subr.mxu0 0.0
        %550 = vmatpush1.msra.mxu0 0.0
        %551 = vmatprep.subr.mxu0 0.0
        %552 = vmatpush1.msra.mxu0 0.0
        %553 = vmatprep.subr.mxu0 0.0
        %554 = vmatpush1.msra.mxu0 0.0
        %555 = vmatprep.subr.mxu0 0.0
        %556 = vmatpush1.msra.mxu0 0.0
        %557 = vmatprep.subr.mxu0 0.0
        %558 = vmatpush1.msra.mxu0 0.0
        %559 = vmatprep.subr.mxu0 0.0
        %560 = vmatpush1.msra.mxu0 0.0
        %561 = vmatprep.subr.mxu0 0.0
        %562 = vmatpush1.msra.mxu0 0.0
        %563 = vmatprep.subr.mxu0 0.0
        %564 = vmatpush1.msra.mxu0 0.0
        %565 = vmatprep.subr.mxu0 0.0
        %566 = vmatpush1.msra.mxu0 0.0
        %567 = vmatprep.subr.mxu0 0.0
        %568 = vmatpush1.msra.mxu0 0.0
        %569 = vmatprep.subr.mxu0 0.0
        %570 = vmatpush1.msra.mxu0 0.0
        %571 = vmatprep.subr.mxu0 0.0
        %572 = vmatpush1.msra.mxu0 0.0
        %573 = vmatprep.subr.mxu0 0.0
        %574 = vmatpush1.msra.mxu0 0.0
        %575 = vmatprep.subr.mxu0 0.0
        %576 = vmatpush1.msra.mxu0 0.0
        %577 = vmatprep.subr.mxu0 0.0
        %578 = vmatpush1.msra.mxu0 0.0
        %579 = vmatprep.subr.mxu0 0.0
        %580 = vmatpush1.msra.mxu0 0.0
        %581 = vmatprep.mubr.f32.mxu0 0.0
        %582 = vmatmul.mubr.f32.gmra.mrb[0].mxu0 %v509
        %v583 = vpop.f32.mrb[0].mxu0
        %v584 = vadd.f32 0.0, %v583
        %v585 = vpop.f32.mrb[0].mxu0
        %v586 = vadd.f32 0.0, %v585
        %587 = vmatprep.mubr.f32.mxu0 0.0
        %588 = vmatmul.mubr.f32.gmra.mrb[0].mxu0 %v512
        %v589 = vpop.f32.mrb[0].mxu0
        %v590 = vadd.f32 0.0, %v589
        %v591 = vpop.f32.mrb[0].mxu0
        %v592 = vadd.f32 0.0, %v591
        %593 = vmatprep.mubr.f32.mxu0 0.0
        %594 = vmatmul.mubr.f32.gmra.mrb[0].mxu0 %v515
        %v595 = vpop.f32.mrb[0].mxu0
        %v596 = vadd.f32 0.0, %v595
        %v597 = vpop.f32.mrb[0].mxu0
        %v598 = vadd.f32 0.0, %v597
        %599 = vdwg.mxu0
        %v600 = vadd.f32 %v470, %v584
        %v601 = vadd.f32 %v472, %v586
        %v602 = vadd.f32 %v476, %v590
        %v603 = vadd.f32 %v478, %v592
        %v604 = vadd.f32 %v482, %v596
        %v605 = vadd.f32 %v484, %v598
        %s606 = sadd.s32 %s258, 3
        %s607 = scalar_lea.vmem %s213, %s606 [#allocation2]
        %v608 = vld [vmem:[%s607] sm:$0xff]
        %v609 = vld [vmem:[%s607 + $0x8] sm:$0xff]
        %v610 = vld [vmem:[%s607 + $0x10] sm:$0xf]
        %s611 = scalar_lea.vmem [#allocation4], 384
        %v612 = vld [vmem:[%s611] sm:$0xff]
        %v613 = vld [vmem:[%s611 + $0x8] sm:$0xff]
        %v614 = vld [vmem:[%s611 + $0x10] sm:$0xff]
        %v615 = vld [vmem:[%s611 + $0x18] sm:$0xff]
        %v616 = vld [vmem:[%s611 + $0x20] sm:$0xff]
        %v617 = vld [vmem:[%s611 + $0x28] sm:$0xff]
        %v618 = vld [vmem:[%s611 + $0x30] sm:$0xff]
        %v619 = vld [vmem:[%s611 + $0x38] sm:$0xff]
        %v620 = vld [vmem:[%s611 + $0x40] sm:$0xff]
        %v621 = vld [vmem:[%s611 + $0x48] sm:$0xff]
        %v622 = vld [vmem:[%s611 + $0x50] sm:$0xff]
        %v623 = vld [vmem:[%s611 + $0x58] sm:$0xff]
        %v624 = vld [vmem:[%s611 + $0x60] sm:$0xff]
        %v625 = vld [vmem:[%s611 + $0x68] sm:$0xff]
        %v626 = vld [vmem:[%s611 + $0x70] sm:$0xff]
        %v627 = vld [vmem:[%s611 + $0x78] sm:$0xff]
        %v629 = vsel %vm301, %v608, 0
        %v632 = vsel %vm301, %v609, 0
        %v635 = vsel %vm301, %v610, 0
        %637 = vmatprep.subr.mxu0 %v613
        %638 = vmatpush1.msra.mxu0 %v612
        %639 = vmatprep.subr.mxu0 %v615
        %640 = vmatpush1.msra.mxu0 %v614
        %641 = vmatprep.subr.mxu0 %v617
        %642 = vmatpush1.msra.mxu0 %v616
        %643 = vmatprep.subr.mxu0 %v619
        %644 = vmatpush1.msra.mxu0 %v618
        %645 = vmatprep.subr.mxu0 %v621
        %646 = vmatpush1.msra.mxu0 %v620
        %647 = vmatprep.subr.mxu0 %v623
        %648 = vmatpush1.msra.mxu0 %v622
        %649 = vmatprep.subr.mxu0 %v625
        %650 = vmatpush1.msra.mxu0 %v624
        %651 = vmatprep.subr.mxu0 %v627
        %652 = vmatpush1.msra.mxu0 %v626
        %653 = vmatprep.subr.mxu0 0.0
        %654 = vmatpush1.msra.mxu0 0.0
        %655 = vmatprep.subr.mxu0 0.0
        %656 = vmatpush1.msra.mxu0 0.0
        %657 = vmatprep.subr.mxu0 0.0
        %658 = vmatpush1.msra.mxu0 0.0
        %659 = vmatprep.subr.mxu0 0.0
        %660 = vmatpush1.msra.mxu0 0.0
        %661 = vmatprep.subr.mxu0 0.0
        %662 = vmatpush1.msra.mxu0 0.0
        %663 = vmatprep.subr.mxu0 0.0
        %664 = vmatpush1.msra.mxu0 0.0
        %665 = vmatprep.subr.mxu0 0.0
        %666 = vmatpush1.msra.mxu0 0.0
        %667 = vmatprep.subr.mxu0 0.0
        %668 = vmatpush1.msra.mxu0 0.0
        %669 = vmatprep.subr.mxu0 0.0
        %670 = vmatpush1.msra.mxu0 0.0
        %671 = vmatprep.subr.mxu0 0.0
        %672 = vmatpush1.msra.mxu0 0.0
        %673 = vmatprep.subr.mxu0 0.0
        %674 = vmatpush1.msra.mxu0 0.0
        %675 = vmatprep.subr.mxu0 0.0
        %676 = vmatpush1.msra.mxu0 0.0
        %677 = vmatprep.subr.mxu0 0.0
        %678 = vmatpush1.msra.mxu0 0.0
        %679 = vmatprep.subr.mxu0 0.0
        %680 = vmatpush1.msra.mxu0 0.0
        %681 = vmatprep.subr.mxu0 0.0
        %682 = vmatpush1.msra.mxu0 0.0
        %683 = vmatprep.subr.mxu0 0.0
        %684 = vmatpush1.msra.mxu0 0.0
        %685 = vmatprep.subr.mxu0 0.0
        %686 = vmatpush1.msra.mxu0 0.0
        %687 = vmatprep.subr.mxu0 0.0
        %688 = vmatpush1.msra.mxu0 0.0
        %689 = vmatprep.subr.mxu0 0.0
        %690 = vmatpush1.msra.mxu0 0.0
        %691 = vmatprep.subr.mxu0 0.0
        %692 = vmatpush1.msra.mxu0 0.0
        %693 = vmatprep.subr.mxu0 0.0
        %694 = vmatpush1.msra.mxu0 0.0
        %695 = vmatprep.subr.mxu0 0.0
        %696 = vmatpush1.msra.mxu0 0.0
        %697 = vmatprep.subr.mxu0 0.0
        %698 = vmatpush1.msra.mxu0 0.0
        %699 = vmatprep.subr.mxu0 0.0
        %700 = vmatpush1.msra.mxu0 0.0
        %701 = vmatprep.mubr.f32.mxu0 0.0
        %702 = vmatmul.mubr.f32.gmra.mrb[0].mxu0 %v629
        %v703 = vpop.f32.mrb[0].mxu0
        %v704 = vadd.f32 0.0, %v703
        %v705 = vpop.f32.mrb[0].mxu0
        %v706 = vadd.f32 0.0, %v705
        %707 = vmatprep.mubr.f32.mxu0 0.0
        %708 = vmatmul.mubr.f32.gmra.mrb[0].mxu0 %v632
        %v709 = vpop.f32.mrb[0].mxu0
        %v710 = vadd.f32 0.0, %v709
        %v711 = vpop.f32.mrb[0].mxu0
        %v712 = vadd.f32 0.0, %v711
        %713 = vmatprep.mubr.f32.mxu0 0.0
        %714 = vmatmul.mubr.f32.gmra.mrb[0].mxu0 %v635
        %v715 = vpop.f32.mrb[0].mxu0
        %v716 = vadd.f32 0.0, %v715
        %v717 = vpop.f32.mrb[0].mxu0
        %v718 = vadd.f32 0.0, %v717
        %719 = vdwg.mxu0
        %v720 = vadd.f32 %v600, %v704
        %v721 = vadd.f32 %v601, %v706
        %v722 = vadd.f32 %v602, %v710
        %v723 = vadd.f32 %v603, %v712
        %v724 = vadd.f32 %v604, %v716
        %v725 = vadd.f32 %v605, %v718
        %s726 = sadd.s32 %s258, 4
        %s727 = scalar_lea.vmem %s213, %s726 [#allocation2]
        %v728 = vld [vmem:[%s727] sm:$0xff]
        %v729 = vld [vmem:[%s727 + $0x8] sm:$0xff]
        %v730 = vld [vmem:[%s727 + $0x10] sm:$0xf]
        %s731 = scalar_lea.vmem [#allocation4], 512
        %v732 = vld [vmem:[%s731] sm:$0xff]
        %v733 = vld [vmem:[%s731 + $0x8] sm:$0xff]
        %v734 = vld [vmem:[%s731 + $0x10] sm:$0xff]
        %v735 = vld [vmem:[%s731 + $0x18] sm:$0xff]
        %v736 = vld [vmem:[%s731 + $0x20] sm:$0xff]
        %v737 = vld [vmem:[%s731 + $0x28] sm:$0xff]
        %v738 = vld [vmem:[%s731 + $0x30] sm:$0xff]
        %v739 = vld [vmem:[%s731 + $0x38] sm:$0xff]
        %v740 = vld [vmem:[%s731 + $0x40] sm:$0xff]
        %v741 = vld [vmem:[%s731 + $0x48] sm:$0xff]
        %v742 = vld [vmem:[%s731 + $0x50] sm:$0xff]
        %v743 = vld [vmem:[%s731 + $0x58] sm:$0xff]
        %v744 = vld [vmem:[%s731 + $0x60] sm:$0xff]
        %v745 = vld [vmem:[%s731 + $0x68] sm:$0xff]
        %v746 = vld [vmem:[%s731 + $0x70] sm:$0xff]
        %v747 = vld [vmem:[%s731 + $0x78] sm:$0xff]
        %v749 = vsel %vm301, %v728, 0
        %v752 = vsel %vm301, %v729, 0
        %v755 = vsel %vm301, %v730, 0
        %757 = vmatprep.subr.mxu0 %v733
        %758 = vmatpush1.msra.mxu0 %v732
        %759 = vmatprep.subr.mxu0 %v735
        %760 = vmatpush1.msra.mxu0 %v734
        %761 = vmatprep.subr.mxu0 %v737
        %762 = vmatpush1.msra.mxu0 %v736
        %763 = vmatprep.subr.mxu0 %v739
        %764 = vmatpush1.msra.mxu0 %v738
        %765 = vmatprep.subr.mxu0 %v741
        %766 = vmatpush1.msra.mxu0 %v740
        %767 = vmatprep.subr.mxu0 %v743
        %768 = vmatpush1.msra.mxu0 %v742
        %769 = vmatprep.subr.mxu0 %v745
        %770 = vmatpush1.msra.mxu0 %v744
        %771 = vmatprep.subr.mxu0 %v747
        %772 = vmatpush1.msra.mxu0 %v746
        %773 = vmatprep.subr.mxu0 0.0
        %774 = vmatpush1.msra.mxu0 0.0
        %775 = vmatprep.subr.mxu0 0.0
        %776 = vmatpush1.msra.mxu0 0.0
        %777 = vmatprep.subr.mxu0 0.0
        %778 = vmatpush1.msra.mxu0 0.0
        %779 = vmatprep.subr.mxu0 0.0
        %780 = vmatpush1.msra.mxu0 0.0
        %781 = vmatprep.subr.mxu0 0.0
        %782 = vmatpush1.msra.mxu0 0.0
        %783 = vmatprep.subr.mxu0 0.0
        %784 = vmatpush1.msra.mxu0 0.0
        %785 = vmatprep.subr.mxu0 0.0
        %786 = vmatpush1.msra.mxu0 0.0
        %787 = vmatprep.subr.mxu0 0.0
        %788 = vmatpush1.msra.mxu0 0.0
        %789 = vmatprep.subr.mxu0 0.0
        %790 = vmatpush1.msra.mxu0 0.0
        %791 = vmatprep.subr.mxu0 0.0
        %792 = vmatpush1.msra.mxu0 0.0
        %793 = vmatprep.subr.mxu0 0.0
        %794 = vmatpush1.msra.mxu0 0.0
        %795 = vmatprep.subr.mxu0 0.0
        %796 = vmatpush1.msra.mxu0 0.0
        %797 = vmatprep.subr.mxu0 0.0
        %798 = vmatpush1.msra.mxu0 0.0
        %799 = vmatprep.subr.mxu0 0.0
        %800 = vmatpush1.msra.mxu0 0.0
        %801 = vmatprep.subr.mxu0 0.0
        %802 = vmatpush1.msra.mxu0 0.0
        %803 = vmatprep.subr.mxu0 0.0
        %804 = vmatpush1.msra.mxu0 0.0
        %805 = vmatprep.subr.mxu0 0.0
        %806 = vmatpush1.msra.mxu0 0.0
        %807 = vmatprep.subr.mxu0 0.0
        %808 = vmatpush1.msra.mxu0 0.0
        %809 = vmatprep.subr.mxu0 0.0
        %810 = vmatpush1.msra.mxu0 0.0
        %811 = vmatprep.subr.mxu0 0.0
        %812 = vmatpush1.msra.mxu0 0.0
        %813 = vmatprep.subr.mxu0 0.0
        %814 = vmatpush1.msra.mxu0 0.0
        %815 = vmatprep.subr.mxu0 0.0
        %816 = vmatpush1.msra.mxu0 0.0
        %817 = vmatprep.subr.mxu0 0.0
        %818 = vmatpush1.msra.mxu0 0.0
        %819 = vmatprep.subr.mxu0 0.0
        %820 = vmatpush1.msra.mxu0 0.0
        %821 = vmatprep.mubr.f32.mxu0 0.0
        %822 = vmatmul.mubr.f32.gmra.mrb[0].mxu0 %v749
        %v823 = vpop.f32.mrb[0].mxu0
        %v824 = vadd.f32 0.0, %v823
        %v825 = vpop.f32.mrb[0].mxu0
        %v826 = vadd.f32 0.0, %v825
        %827 = vmatprep.mubr.f32.mxu0 0.0
        %828 = vmatmul.mubr.f32.gmra.mrb[0].mxu0 %v752
        %v829 = vpop.f32.mrb[0].mxu0
        %v830 = vadd.f32 0.0, %v829
        %v831 = vpop.f32.mrb[0].mxu0
        %v832 = vadd.f32 0.0, %v831
        %833 = vmatprep.mubr.f32.mxu0 0.0
        %834 = vmatmul.mubr.f32.gmra.mrb[0].mxu0 %v755
        %v835 = vpop.f32.mrb[0].mxu0
        %v836 = vadd.f32 0.0, %v835
        %v837 = vpop.f32.mrb[0].mxu0
        %v838 = vadd.f32 0.0, %v837
        %839 = vdwg.mxu0
        %v840 = vadd.f32 %v720, %v824
        %v841 = vadd.f32 %v721, %v826
        %v842 = vadd.f32 %v722, %v830
        %v843 = vadd.f32 %v723, %v832
        %v844 = vadd.f32 %v724, %v836
        %v845 = vadd.f32 %v725, %v838
        %v846 = vld [vmem:[%s2] sm:$0x3]
        %v848 = vlaneseq
        %v849 = vshrl.u32 %v848, 7
        %v850 = vsub.s32 0, %v849
        %v851 = vrot.slane %v846, %v850
        %v852 = vlaneseq
        %v853 = vshrl.u32 %v852, 7
        %v854 = vsub.s32 1, %v853
        %v855 = vrot.slane %v846, %v854
        %v858 = vmul.f32 %v840, %v851
        %v859 = vmul.f32 %v841, %v855
        %v860 = vmul.f32 %v842, %v851
        %v861 = vmul.f32 %v843, %v855
        %v862 = vmul.f32 %v844, %v851
        %v863 = vmul.f32 %v845, %v855
        %v864 = vld [vmem:[%s3] sm:$0x3]
        %v866 = vlaneseq
        %v867 = vshrl.u32 %v866, 7
        %v868 = vsub.s32 0, %v867
        %v869 = vrot.slane %v864, %v868
        %v870 = vlaneseq
        %v871 = vshrl.u32 %v870, 7
        %v872 = vsub.s32 1, %v871
        %v873 = vrot.slane %v864, %v872
        %v876 = vadd.f32 %v858, %v869
        %v877 = vadd.f32 %v859, %v873
        %v878 = vadd.f32 %v860, %v869
        %v879 = vadd.f32 %v861, %v873
        %v880 = vadd.f32 %v862, %v869
        %v881 = vadd.f32 %v863, %v873
        %v882 = vmax.f32 %v876, 0.0
        %v883 = vmax.f32 %v877, 0.0
        %v884 = vmax.f32 %v878, 0.0
        %v885 = vmax.f32 %v879, 0.0
        %v886 = vmax.f32 %v880, 0.0
        %v887 = vmax.f32 %v881, 0.0
        %888 = vst [vmem:[%s256] sm:$0xff] %v882
        %vm889 = vcmask 261120
        %890 = vst.msk [vmem:[%s256 + $0x8] sm:$0xff] %vm889, %v883
        %891 = vst [vmem:[%s256 + $0x10] sm:$0xff] %v884
        %892 = vst.msk [vmem:[%s256 + $0x18] sm:$0xff] %vm889, %v885
        %893 = vst [vmem:[%s256 + $0x20] sm:$0xf] %v886
        %vm894 = vcmask 257024
        %895 = vst.msk [vmem:[%s256 + $0x28] sm:$0xf] %vm894, %v887
        %s896 = smul.u32 3, %s24
        %p897 = scmp.lt.s32.totalorder %s23, 1
        %s898 = scalar_select %p897, %s23, 1
        %p899 = scmp.lt.s32.totalorder %s896, 2
        %s900 = scalar_select %p899, %s896, 2
        %s901 = smul.addr %s900, 2
        %s902 = smul.addr %s898, 6
        %s903 = sadd.s32 %s901, %s902
        %s904 = smul.addr %s903, 8
        %s905 = scalar_lea.vmem %s4, %s904
        // Predicated region
        $region45: #{tpu_custom_call.1} parent=35 // pred_check
          %p906 = pneg %p140
        $region46: #{tpu_custom_call.1} parent=35 // pred_check_branch
          %908 = sbr.rel (%p906) target = $region48
        $region47: #{tpu_custom_call.1} parent=35 // pred_region
          %s909 = smul.u32 3, %s24
        $region48: #{tpu_custom_call.1} parent=35 // pred_fallthru
          _
      $region36: #{tpu_custom_call.1} parent=5 // pred_fallthru
        _
      %p910 = scmp.le.s32.totalorder 2, %s14
      // Predicated region
      $region49: #{tpu_custom_call.1} parent=5 // pred_check
        %p911 = pneg %p910
      $region50: #{tpu_custom_call.1} parent=5 // pred_check_branch
        %913 = sbr.rel (%p911) target = $region52
      $region51: #{tpu_custom_call.1} parent=5 // pred_region
        %s914 = ssub.s32 %s14, 2
        // Predicated region
        $region53: #{tpu_custom_call.1} parent=51 // pred_check
          %p915 = pneg %p146
        $region54: #{tpu_custom_call.1} parent=51 // pred_check_branch
          %917 = sbr.rel (%p915) target = $region56
        $region55: #{tpu_custom_call.1} parent=51 // pred_region
          %s918 = smul.u32 3, %s26
          %p919 = scmp.lt.s32.totalorder %s25, 1
          %s920 = scalar_select %p919, %s25, 1
          %p921 = scmp.lt.s32.totalorder %s918, 2
          %s922 = scalar_select %p921, %s918, 2
          %s923 = smul.addr %s922, 2
          %s924 = smul.addr %s920, 6
          %s925 = sadd.s32 %s923, %s924
          %s926 = smul.addr %s925, 8
          %s927 = scalar_lea.vmem %s4, %s926
        $region56: #{tpu_custom_call.1} parent=51 // pred_fallthru
          _
      $region52: #{tpu_custom_call.1} parent=5 // pred_fallthru
        _
    $region6: #{tpu_custom_call.1} parent=1 // loop_footer
      %s18 = sadd.s32 1, %s14
    $region7: #{tpu_custom_call.1} parent=1 // loop_footer_branch
      %13 = sbr.rel target = $region3
    $region8: #{tpu_custom_call.1} parent=1 // loop_exit
      _
    %928 = vsyncpa [#allocation3], 1
    %s929 = scalar_lea.sflag [#allocation3], 1
    %930 = vsyncpa %s929, 1
    %931 = vsyncpa [#allocation5], 1

</llo_original>
